<compile_context>
chip_gen: v7x
topology: tpu7x:2x2x1
jax: 0.10.0
libtpu: 0.0.40
codegen_flags: <defaults>
</compile_context>

<pallas_src>
import functools

import jax
import jax.numpy as jnp
from jax.experimental import pallas as pl
from jax.experimental.pallas import tpu as pltpu

DOF = 3
STATE_DIM = DOF * 2          # env.observation_space.shape[0] == 6
ACTION_DIM = DOF             # env.action_space.shape[0]      == 3
HIDDEN_DIM = (32, 32)        # hidden_dim list passed to the module
PRELU_INIT = 0.25            # torch.nn.PReLU() default


def _round_up(n, m):
    return (n + m - 1) // m * m


def _cdiv(a, b):
    return (a + b - 1) // b


def _make_mlp_kernel(num_hidden):
    """One grid step processes a (in_dim, TB) batch tile fully in VMEM."""

    def kernel(scal_ref, cat_ref, *refs):
        out_ref = refs[-1]
        prefs = refs[:-1]          # [wT_i, bT_i] per hidden layer, then w_out
        alpha = scal_ref[0]        # shared PReLU alpha (SMEM scalar)
        b_out = scal_ref[1]        # fc_out bias        (SMEM scalar)

        h = cat_ref[...]                              # (in_dim, TB), batch in lanes
        idx = 0
        for _ in range(num_hidden):                   # static Python unroll
            w = prefs[idx][...]                       # (H_i, prev)
            b = prefs[idx + 1][...]                   # (H_i, 1)
            idx += 2
            h = jnp.dot(w, h, preferred_element_type=jnp.float32) + b
            h = jnp.where(h > 0, h, alpha * h)        # full-lane PReLU

        # fc_out (N=1): VPU multiply + sublane reduce -> lane-dense (1, TB) row.
        w_out = prefs[idx][...]                       # (H_last, 1)
        out_ref[...] = jnp.sum(h * w_out, axis=0, keepdims=True) + b_out

    return kernel


@functools.partial(jax.jit, static_argnames=("num_hidden", "block_b"))
def qvalue_forward(x, a, alpha, weights, biases, *, num_hidden, block_b=2048):
    """x: (B, STATE_DIM), a: (B, ACTION_DIM) -> (B, 1)  (all float32)."""
    B = x.shape[0]

    # Padding-aware tile selection; >=2 tiles when there is enough work so the
    # "parallel" axis can feed both TensorCores on v7x (cheap no-op elsewhere).
    min_tiles = 2 if B >= 256 else 1
    n_tiles = max(min_tiles, _cdiv(B, block_b))
    TB = _round_up(_cdiv(B, n_tiles), 128)            # lane-dense tile width
    n_tiles = max(min_tiles, _cdiv(B, TB))
    B_pad = n_tiles * TB

    # Wrapper-side layout plumbing (arrays are tiny): concat once, transpose so
    # the batch lives on the lane axis inside the kernel.
    cat = jnp.concatenate([x, a], axis=1)             # (B, in_dim)
    if B_pad != B:
        cat = jnp.pad(cat, ((0, B_pad - B), (0, 0)))
    cat_t = cat.T                                     # (in_dim, B_pad)
    in_dim = cat_t.shape[0]

    # Pre-transposed parameters: h_new = W^T @ h + b^T.
    w_t = [weights[i].T for i in range(num_hidden)]             # (H_i, prev)
    b_t = [biases[i].reshape(-1, 1) for i in range(num_hidden)]  # (H_i, 1)
    w_out = weights[num_hidden].reshape(-1, 1)                   # (H_last, 1)
    scal = jnp.concatenate([alpha.reshape(-1),
                            biases[num_hidden].reshape(-1)])     # (2,)

    operands = [scal, cat_t]
    in_specs = [
        pl.BlockSpec(memory_space=pltpu.MemorySpace.SMEM),        # [alpha, b_out]
        pl.BlockSpec((in_dim, TB), lambda g: (0, g)),             # batch tile
    ]
    for li in range(num_hidden):
        operands += [w_t[li], b_t[li]]
        in_specs += [pl.BlockSpec(w_t[li].shape, lambda g: (0, 0)),   # VMEM-resident
                     pl.BlockSpec(b_t[li].shape, lambda g: (0, 0))]
    operands.append(w_out)
    in_specs.append(pl.BlockSpec(w_out.shape, lambda g: (0, 0)))

    # Advisory cost hint so XLA schedules/overlaps the tiny custom call.
    dims = [in_dim] + [weights[i].shape[1] for i in range(num_hidden)] + [1]
    flops = 2 * B_pad * sum(dims[i] * dims[i + 1] for i in range(len(dims) - 1))
    param_bytes = 4 * (sum(int(w.size) for w in weights)
                       + sum(int(b.size) for b in biases) + 1)
    bytes_accessed = 4 * B_pad * (in_dim + 1) + param_bytes

    out = pl.pallas_call(
        _make_mlp_kernel(num_hidden),
        grid=(n_tiles,),
        out_shape=jax.ShapeDtypeStruct((1, B_pad), jnp.float32),
        in_specs=in_specs,
        out_specs=pl.BlockSpec((1, TB), lambda g: (0, g)),        # lane-dense rows
        compiler_params=pltpu.CompilerParams(
            dimension_semantics=("parallel",)),   # megacore on v7x, no-op v5e/v6e
        cost_estimate=pl.CostEstimate(
            flops=flops, transcendentals=0, bytes_accessed=bytes_accessed),
    )(*operands)
    return out[0, :B].reshape(B, 1)


def init_params(key, state_dim, hidden_dim, action_dim):
    """Deterministic synthetic init (shapes match the torch module)."""
    weights, biases = [], []
    prev = state_dim + action_dim
    dims = list(hidden_dim) + [1]  # hidden layers + fc_out
    for d in dims:
        key, kw, kb = jax.random.split(key, 3)
        scale = 1.0 / jnp.sqrt(jnp.float32(prev))
        weights.append(jax.random.uniform(kw, (prev, d), jnp.float32, -scale, scale))
        biases.append(jax.random.uniform(kb, (1, d), jnp.float32, -scale, scale))
        prev = d
    alpha = jnp.full((1,), PRELU_INIT, dtype=jnp.float32)
    return alpha, weights, biases


def reference_forward(x, a, alpha, weights, biases, num_hidden):
    h = jnp.concatenate([x, a], axis=1)
    al = alpha[0]
    for i in range(num_hidden):
        h = h @ weights[i] + biases[i]
        h = jnp.where(h > 0, h, al * h)
    return h @ weights[num_hidden] + biases[num_hidden]


if __name__ == "__main__":
    key = jax.random.PRNGKey(0)
    kx, ka, kp, kx2, ka2 = jax.random.split(key, 5)

    alpha, weights, biases = init_params(kp, STATE_DIM, HIDDEN_DIM, ACTION_DIM)
    nh = len(HIDDEN_DIM)

    # Small demo batch (single grid step, lane-padded to 128).
    B = 8
    x = jax.random.normal(kx, (B, STATE_DIM), dtype=jnp.float32)
    a = jax.random.uniform(ka, (B, ACTION_DIM), jnp.float32, -1.0, 1.0)
    out = jax.block_until_ready(
        qvalue_forward(x, a, alpha, weights, biases, num_hidden=nh))
    ref = reference_forward(x, a, alpha, weights, biases, nh)
    assert out.shape == (B, 1)
    assert jnp.allclose(out, ref, atol=1e-4, rtol=1e-4)

    # Larger, non-tile-aligned batch exercises the multi-tile grid + tail padding.
    B2 = 1000
    x2 = jax.random.normal(kx2, (B2, STATE_DIM), dtype=jnp.float32)
    a2 = jax.random.uniform(ka2, (B2, ACTION_DIM), jnp.float32, -1.0, 1.0)
    out2 = jax.block_until_ready(
        qvalue_forward(x2, a2, alpha, weights, biases, num_hidden=nh))
    ref2 = reference_forward(x2, a2, alpha, weights, biases, nh)
    assert out2.shape == (B2, 1)
    assert jnp.allclose(out2, ref2, atol=1e-4, rtol=1e-4)

    print("KERNEL_OK")
</pallas_src>

<mosaic_0001>
module attributes {stable_mosaic.version = 11 : i64} {
  func.func @kernel(%arg0: i32, %arg1: memref<2xf32, #tpu.memory_space<smem>>, %arg2: memref<9x128xf32, #tpu.memory_space<vmem>>, %arg3: memref<32x9xf32, #tpu.memory_space<vmem>>, %arg4: memref<32x1xf32, #tpu.memory_space<vmem>>, %arg5: memref<32x32xf32, #tpu.memory_space<vmem>>, %arg6: memref<32x1xf32, #tpu.memory_space<vmem>>, %arg7: memref<32x1xf32, #tpu.memory_space<vmem>>, %arg8: memref<1x128xf32, #tpu.memory_space<vmem>>) attributes {dimension_semantics = [#tpu.dimension_semantics<parallel>], iteration_bounds = array<i64: 1>, scalar_prefetch = 0 : i64, scratch_operands = 0 : i64, tpu.core_type = #tpu.core_type<tc>, window_params = [{transform_indices = @transform_0, window_bounds = array<i64: 2>}, {transform_indices = @transform_1, window_bounds = array<i64: 9, 128>}, {pipeline_mode = #tpu.pipeline_mode<synchronous>, transform_indices = @transform_2, window_bounds = array<i64: 32, 9>}, {pipeline_mode = #tpu.pipeline_mode<synchronous>, transform_indices = @transform_3, window_bounds = array<i64: 32, 1>}, {pipeline_mode = #tpu.pipeline_mode<synchronous>, transform_indices = @transform_4, window_bounds = array<i64: 32, 32>}, {pipeline_mode = #tpu.pipeline_mode<synchronous>, transform_indices = @transform_5, window_bounds = array<i64: 32, 1>}, {pipeline_mode = #tpu.pipeline_mode<synchronous>, transform_indices = @transform_6, window_bounds = array<i64: 32, 1>}, {transform_indices = @transform_7, window_bounds = array<i64: 1, 128>}]} {
    %c0 = arith.constant 0 : index
    %0 = memref.load %arg1[%c0] : memref<2xf32, #tpu.memory_space<smem>>
    %c1 = arith.constant 1 : index
    %1 = memref.load %arg1[%c1] : memref<2xf32, #tpu.memory_space<smem>>
    %c0_0 = arith.constant 0 : index
    %c0_1 = arith.constant 0 : index
    %2 = vector.load %arg2[%c0_0, %c0_1] : memref<9x128xf32, #tpu.memory_space<vmem>>, vector<9x128xf32>
    %c0_2 = arith.constant 0 : index
    %c0_3 = arith.constant 0 : index
    %3 = vector.load %arg3[%c0_2, %c0_3] : memref<32x9xf32, #tpu.memory_space<vmem>>, vector<32x9xf32>
    %c0_4 = arith.constant 0 : index
    %c0_5 = arith.constant 0 : index
    %4 = vector.load %arg4[%c0_4, %c0_5] : memref<32x1xf32, #tpu.memory_space<vmem>>, vector<32x1xf32>
    %cst = arith.constant dense<0.000000e+00> : vector<32x128xf32>
    %5 = tpu.matmul %3, %2, %cst {dimension_numbers = #tpu.dot_dimension_numbers<[1], [0], [0], [1], [0, 0, 1, 1], [], []>} : vector<32x9xf32>, vector<9x128xf32>, vector<32x128xf32> -> vector<32x128xf32>
    %6 = vector.broadcast %4 : vector<32x1xf32> to vector<32x128xf32>
    %7 = arith.addf %5, %6 : vector<32x128xf32>
    %cst_6 = arith.constant 0.000000e+00 : f32
    %8 = vector.broadcast %cst_6 : f32 to vector<32x128xf32>
    %9 = arith.cmpf ogt, %7, %8 : vector<32x128xf32>
    %10 = vector.broadcast %0 : f32 to vector<32x128xf32>
    %11 = arith.mulf %10, %7 : vector<32x128xf32>
    %12 = arith.select %9, %7, %11 : vector<32x128xi1>, vector<32x128xf32>
    %c0_7 = arith.constant 0 : index
    %c0_8 = arith.constant 0 : index
    %13 = vector.load %arg5[%c0_7, %c0_8] : memref<32x32xf32, #tpu.memory_space<vmem>>, vector<32x32xf32>
    %c0_9 = arith.constant 0 : index
    %c0_10 = arith.constant 0 : index
    %14 = vector.load %arg6[%c0_9, %c0_10] : memref<32x1xf32, #tpu.memory_space<vmem>>, vector<32x1xf32>
    %cst_11 = arith.constant dense<0.000000e+00> : vector<32x128xf32>
    %15 = tpu.matmul %13, %12, %cst_11 {dimension_numbers = #tpu.dot_dimension_numbers<[1], [0], [0], [1], [0, 0, 1, 1], [], []>} : vector<32x32xf32>, vector<32x128xf32>, vector<32x128xf32> -> vector<32x128xf32>
    %16 = vector.broadcast %14 : vector<32x1xf32> to vector<32x128xf32>
    %17 = arith.addf %15, %16 : vector<32x128xf32>
    %cst_12 = arith.constant 0.000000e+00 : f32
    %18 = vector.broadcast %cst_12 : f32 to vector<32x128xf32>
    %19 = arith.cmpf ogt, %17, %18 : vector<32x128xf32>
    %20 = vector.broadcast %0 : f32 to vector<32x128xf32>
    %21 = arith.mulf %20, %17 : vector<32x128xf32>
    %22 = arith.select %19, %17, %21 : vector<32x128xi1>, vector<32x128xf32>
    %c0_13 = arith.constant 0 : index
    %c0_14 = arith.constant 0 : index
    %23 = vector.load %arg7[%c0_13, %c0_14] : memref<32x1xf32, #tpu.memory_space<vmem>>, vector<32x1xf32>
    %24 = vector.broadcast %23 : vector<32x1xf32> to vector<32x128xf32>
    %25 = arith.mulf %22, %24 : vector<32x128xf32>
    %cst_15 = arith.constant dense<0.000000e+00> : vector<128xf32>
    %26 = vector.multi_reduction <add>, %25, %cst_15 [0] : vector<32x128xf32> to vector<128xf32>
    %27 = vector.shape_cast %26 : vector<128xf32> to vector<1x128xf32>
    %28 = vector.broadcast %1 : f32 to vector<1x128xf32>
    %29 = arith.addf %27, %28 : vector<1x128xf32>
    %c0_16 = arith.constant 0 : index
    %c0_17 = arith.constant 0 : index
    %30 = vector.load %arg8[%c0_16, %c0_17] : memref<1x128xf32, #tpu.memory_space<vmem>>, vector<1x128xf32>
    tpu.vector_store %arg8[%c0_16, %c0_17], %29 {strides = array<i32>} : memref<1x128xf32, #tpu.memory_space<vmem>>, vector<1x128xf32>,
    return
  }
  func.func @transform_0(%arg0: i32) -> i32 {
    %c0_i32 = arith.constant 0 : i32
    %c0_i32_0 = arith.constant 0 : i32
    return %c0_i32 : i32
  }
  func.func @transform_1(%arg0: i32) -> (i32, i32) {
    %c0_i32 = arith.constant 0 : i32
    %c0_i32_0 = arith.constant 0 : i32
    return %c0_i32, %arg0 : i32, i32
  }
  func.func @transform_2(%arg0: i32) -> (i32, i32) {
    %c0_i32 = arith.constant 0 : i32
    %c0_i32_0 = arith.constant 0 : i32
    %c0_i32_1 = arith.constant 0 : i32
    return %c0_i32, %c0_i32_0 : i32, i32
  }
  func.func @transform_3(%arg0: i32) -> (i32, i32) {
    %c0_i32 = arith.constant 0 : i32
    %c0_i32_0 = arith.constant 0 : i32
    %c0_i32_1 = arith.constant 0 : i32
    return %c0_i32, %c0_i32_0 : i32, i32
  }
  func.func @transform_4(%arg0: i32) -> (i32, i32) {
    %c0_i32 = arith.constant 0 : i32
    %c0_i32_0 = arith.constant 0 : i32
    %c0_i32_1 = arith.constant 0 : i32
    return %c0_i32, %c0_i32_0 : i32, i32
  }
  func.func @transform_5(%arg0: i32) -> (i32, i32) {
    %c0_i32 = arith.constant 0 : i32
    %c0_i32_0 = arith.constant 0 : i32
    %c0_i32_1 = arith.constant 0 : i32
    return %c0_i32, %c0_i32_0 : i32, i32
  }
  func.func @transform_6(%arg0: i32) -> (i32, i32) {
    %c0_i32 = arith.constant 0 : i32
    %c0_i32_0 = arith.constant 0 : i32
    %c0_i32_1 = arith.constant 0 : i32
    return %c0_i32, %c0_i32_0 : i32, i32
  }
  func.func @transform_7(%arg0: i32) -> (i32, i32) {
    %c0_i32 = arith.constant 0 : i32
    %c0_i32_0 = arith.constant 0 : i32
    return %c0_i32, %arg0 : i32, i32
  }
}

</mosaic_0001>

<llo_original>
// kernel: qvalue_forward.1
$region0: #{qvalue_forward.1}
  #allocation0 [shape = 'u32[]', space=smem, size = 0x4, offset = 0x4, fixed_abs, tag = 'smem constant byte address 0x4 - core index']
  #allocation1 [shape = 'u32[144,128]{1,0:T(1,128)}', space=vmem, size = 0x12000, scoped, tag = 'internal scratch']
  %s0 = inlined_call_operand.vmem [shape: f32[2], index: 0, kind: input, shape index: {}]
  %s1 = inlined_call_operand.vmem [shape: f32[9,128], index: 1, kind: input, shape index: {}]
  %s2 = inlined_call_operand.vmem [shape: f32[32,9], index: 2, kind: input, shape index: {}]
  %s3 = inlined_call_operand.vmem [shape: f32[32,1], index: 3, kind: input, shape index: {}]
  %s4 = inlined_call_operand.vmem [shape: f32[32,32], index: 4, kind: input, shape index: {}]
  %s5 = inlined_call_operand.vmem [shape: f32[32,1], index: 5, kind: input, shape index: {}]
  %s6 = inlined_call_operand.vmem [shape: f32[32,1], index: 6, kind: input, shape index: {}]
  %s7 = inlined_call_operand.vmem [shape: f32[1,128], index: 7, kind: output, shape index: {}]
  %s8 = sld [smem:[#allocation0]]
  $region42: #{qvalue_forward.1} parent=0
    _
  %s10 = ssub.s32 1, %s8
  %s11 = scalar_select 0, %s10, %s8
  $region1: #{qvalue_forward.1} parent=0
    #allocation2 [shape = 'u8[512]{0}', space=smem, size = 0x200, scoped, tag = 'input window, operand 0, single buffered']
    #allocation3 [shape = 's32[1]{0}', space=sflag, size = 0x4, scoped, tag = 'scoped memory for qvalue_forward.1']
    %12 = vsyncpa [#allocation3], 0
    // Predicated region
    $region2: #{qvalue_forward.1} parent=1 // pred_check
      _
    $region3: #{qvalue_forward.1} parent=1 // pred_check_branch
      %14 = sbr.rel (0) target = $region5
    $region4: #{qvalue_forward.1} parent=1 // pred_region
      %s16 = ssub.s32 16, 16
      %17 = vsyncadd [#allocation3], %s16
      %s19 = sshll.u32 %s0, 4
      %s20 = int_to_ptr.vmem [resolvable:$true] %s19
      %22 = dma.vmem_to_smem %s20, 16, [#allocation2], [#allocation3]
    $region5: #{qvalue_forward.1} parent=1 // pred_fallthru
      _
    // Predicated region
    $region6: #{qvalue_forward.1} parent=1 // pred_check
      _
    $region7: #{qvalue_forward.1} parent=1 // pred_check_branch
      %24 = sbr.rel (0) target = $region9
    $region8: #{qvalue_forward.1} parent=1 // pred_region
      _
    $region9: #{qvalue_forward.1} parent=1 // pred_fallthru
      _
    // Predicated region
    $region10: #{qvalue_forward.1} parent=1 // pred_check
      _
    $region11: #{qvalue_forward.1} parent=1 // pred_check_branch
      %26 = sbr.rel (0) target = $region13
    $region12: #{qvalue_forward.1} parent=1 // pred_region
      _
    $region13: #{qvalue_forward.1} parent=1 // pred_fallthru
      _
    // Predicated region
    $region14: #{qvalue_forward.1} parent=1 // pred_check
      _
    $region15: #{qvalue_forward.1} parent=1 // pred_check_branch
      %28 = sbr.rel (0) target = $region17
    $region16: #{qvalue_forward.1} parent=1 // pred_region
      _
    $region17: #{qvalue_forward.1} parent=1 // pred_fallthru
      _
    // Predicated region
    $region18: #{qvalue_forward.1} parent=1 // pred_check
      _
    $region19: #{qvalue_forward.1} parent=1 // pred_check_branch
      %30 = sbr.rel (0) target = $region21
    $region20: #{qvalue_forward.1} parent=1 // pred_region
      _
    $region21: #{qvalue_forward.1} parent=1 // pred_fallthru
      _
    // Predicated region
    $region22: #{qvalue_forward.1} parent=1 // pred_check
      _
    $region23: #{qvalue_forward.1} parent=1 // pred_check_branch
      %32 = sbr.rel (0) target = $region25
    $region24: #{qvalue_forward.1} parent=1 // pred_region
      _
    $region25: #{qvalue_forward.1} parent=1 // pred_fallthru
      _
    // Predicated region
    $region26: #{qvalue_forward.1} parent=1 // pred_check
      _
    $region27: #{qvalue_forward.1} parent=1 // pred_check_branch
      %34 = sbr.rel (0) target = $region29
    $region28: #{qvalue_forward.1} parent=1 // pred_region
      _
    $region29: #{qvalue_forward.1} parent=1 // pred_fallthru
      _
    // Predicated region
    $region30: #{qvalue_forward.1} parent=1 // pred_check
      _
    $region31: #{qvalue_forward.1} parent=1 // pred_check_branch
      %36 = sbr.rel (0) target = $region33
    $region32: #{qvalue_forward.1} parent=1 // pred_region
      %37 = dma.done [#allocation3], 16
    $region33: #{qvalue_forward.1} parent=1 // pred_fallthru
      _
    %38 = sfence
    %s39 = sld [smem:[#allocation2]]
    %s40 = sld [smem:[#allocation2 + $0x1]]
    %v41 = vld [vmem:[%s1] sm:$0xff]
    %v42 = vld [vmem:[%s1 + $0x8] sm:$0x1]
    %v43 = vld [vmem:[%s2] sm:$0xff]
    %v44 = vld [vmem:[%s2 + $0x8] sm:$0xff]
    %v45 = vld [vmem:[%s2 + $0x10] sm:$0xff]
    %v46 = vld [vmem:[%s2 + $0x18] sm:$0xff]
    %v47 = vld [vmem:[%s3] sm:$0xff]
    %v48 = vld [vmem:[%s3 + $0x8] sm:$0xff]
    %v49 = vld [vmem:[%s3 + $0x10] sm:$0xff]
    %v50 = vld [vmem:[%s3 + $0x18] sm:$0xff]
    %52 = vset.pattern.permute.xlu0 0
    %53 = vperm.xlu0 %52, %v47
    %v54 = vpop.permute.xlu0 %53
    %57 = vset.pattern.permute.xlu0 0
    %58 = vperm.xlu0 %57, %v48
    %v59 = vpop.permute.xlu0 %58
    %62 = vset.pattern.permute.xlu0 0
    %63 = vperm.xlu0 %62, %v49
    %v64 = vpop.permute.xlu0 %63
    %67 = vset.pattern.permute.xlu0 0
    %68 = vperm.xlu0 %67, %v50
    %v69 = vpop.permute.xlu0 %68
    %vm71 = vcmask 72704
    %v73 = vsel %vm71, %v43, 0
    %v76 = vsel %vm71, %v44, 0
    %v79 = vsel %vm71, %v45, 0
    %v82 = vsel %vm71, %v46, 0
    %vm84 = vcmask 1040384
    %v86 = vsel %vm84, %v42, 0
    %88 = vmatprep.subr.mxu0 0.0
    %89 = vmatpush1.msra.mxu0 %v41
    %90 = vmatprep.subr.mxu0 0.0
    %91 = vmatpush1.msra.mxu0 %v86
    %92 = vmatprep.subr.mxu0 0.0
    %93 = vmatpush1.msra.mxu0 0.0
    %94 = vmatprep.subr.mxu0 0.0
    %95 = vmatpush1.msra.mxu0 0.0
    %96 = vmatprep.subr.mxu0 0.0
    %97 = vmatpush1.msra.mxu0 0.0
    %98 = vmatprep.subr.mxu0 0.0
    %99 = vmatpush1.msra.mxu0 0.0
    %100 = vmatprep.subr.mxu0 0.0
    %101 = vmatpush1.msra.mxu0 0.0
    %102 = vmatprep.subr.mxu0 0.0
    %103 = vmatpush1.msra.mxu0 0.0
    %104 = vmatprep.subr.mxu0 0.0
    %105 = vmatpush1.msra.mxu0 0.0
    %106 = vmatprep.subr.mxu0 0.0
    %107 = vmatpush1.msra.mxu0 0.0
    %108 = vmatprep.subr.mxu0 0.0
    %109 = vmatpush1.msra.mxu0 0.0
    %110 = vmatprep.subr.mxu0 0.0
    %111 = vmatpush1.msra.mxu0 0.0
    %112 = vmatprep.subr.mxu0 0.0
    %113 = vmatpush1.msra.mxu0 0.0
    %114 = vmatprep.subr.mxu0 0.0
    %115 = vmatpush1.msra.mxu0 0.0
    %116 = vmatprep.subr.mxu0 0.0
    %117 = vmatpush1.msra.mxu0 0.0
    %118 = vmatprep.subr.mxu0 0.0
    %119 = vmatpush1.msra.mxu0 0.0
    %120 = vmatprep.subr.mxu0 0.0
    %121 = vmatpush1.msra.mxu0 0.0
    %122 = vmatprep.subr.mxu0 0.0
    %123 = vmatpush1.msra.mxu0 0.0
    %124 = vmatprep.subr.mxu0 0.0
    %125 = vmatpush1.msra.mxu0 0.0
    %126 = vmatprep.subr.mxu0 0.0
    %127 = vmatpush1.msra.mxu0 0.0
    %128 = vmatprep.subr.mxu0 0.0
    %129 = vmatpush1.msra.mxu0 0.0
    %130 = vmatprep.subr.mxu0 0.0
    %131 = vmatpush1.msra.mxu0 0.0
    %132 = vmatprep.subr.mxu0 0.0
    %133 = vmatpush1.msra.mxu0 0.0
    %134 = vmatprep.subr.mxu0 0.0
    %135 = vmatpush1.msra.mxu0 0.0
    %136 = vmatprep.subr.mxu0 0.0
    %137 = vmatpush1.msra.mxu0 0.0
    %138 = vmatprep.subr.mxu0 0.0
    %139 = vmatpush1.msra.mxu0 0.0
    %140 = vmatprep.subr.mxu0 0.0
    %141 = vmatpush1.msra.mxu0 0.0
    %142 = vmatprep.subr.mxu0 0.0
    %143 = vmatpush1.msra.mxu0 0.0
    %144 = vmatprep.subr.mxu0 0.0
    %145 = vmatpush1.msra.mxu0 0.0
    %146 = vmatprep.subr.mxu0 0.0
    %147 = vmatpush1.msra.mxu0 0.0
    %148 = vmatprep.subr.mxu0 0.0
    %149 = vmatpush1.msra.mxu0 0.0
    %150 = vmatprep.subr.mxu0 0.0
    %151 = vmatpush1.msra.mxu0 0.0
    %152 = vmatprep.mubr.f32.mxu0 0.0
    %153 = vmatmul.mubr.f32.gmra.mrb[0].mxu0 %v73
    %v154 = vpop.f32.mrb[0].mxu0
    %v155 = vadd.f32 %v54, %v154
    %v156 = vpop.f32.mrb[0].mxu0
    %157 = vmatprep.mubr.f32.mxu0 0.0
    %158 = vmatmul.mubr.f32.gmra.mrb[0].mxu0 %v76
    %v159 = vpop.f32.mrb[0].mxu0
    %v160 = vadd.f32 %v59, %v159
    %v161 = vpop.f32.mrb[0].mxu0
    %162 = vmatprep.mubr.f32.mxu0 0.0
    %163 = vmatmul.mubr.f32.gmra.mrb[0].mxu0 %v79
    %v164 = vpop.f32.mrb[0].mxu0
    %v165 = vadd.f32 %v64, %v164
    %v166 = vpop.f32.mrb[0].mxu0
    %167 = vmatprep.mubr.f32.mxu0 0.0
    %168 = vmatmul.mubr.f32.gmra.mrb[0].mxu0 %v82
    %v169 = vpop.f32.mrb[0].mxu0
    %v170 = vadd.f32 %v69, %v169
    %v171 = vpop.f32.mrb[0].mxu0
    %172 = vdwg.mxu0
    %vm173 = vcmp.gt.f32.partialorder %v155, 0.0
    %vm174 = vcmp.gt.f32.partialorder %v160, 0.0
    %vm175 = vcmp.gt.f32.partialorder %v165, 0.0
    %vm176 = vcmp.gt.f32.partialorder %v170, 0.0
    %v177 = vstv %s39
    %v178 = vmul.f32 %v177, %v155
    %v179 = vmul.f32 %v177, %v160
    %v180 = vmul.f32 %v177, %v165
    %v181 = vmul.f32 %v177, %v170
    %v182 = vsel %vm173, %v155, %v178
    %v183 = vsel %vm174, %v160, %v179
    %v184 = vsel %vm175, %v165, %v180
    %v185 = vsel %vm176, %v170, %v181
    %v186 = vld [vmem:[%s4] sm:$0xff]
    %v187 = vld [vmem:[%s4 + $0x8] sm:$0xff]
    %v188 = vld [vmem:[%s4 + $0x10] sm:$0xff]
    %v189 = vld [vmem:[%s4 + $0x18] sm:$0xff]
    %v190 = vld [vmem:[%s5] sm:$0xff]
    %v191 = vld [vmem:[%s5 + $0x8] sm:$0xff]
    %v192 = vld [vmem:[%s5 + $0x10] sm:$0xff]
    %v193 = vld [vmem:[%s5 + $0x18] sm:$0xff]
    %195 = vset.pattern.permute.xlu0 0
    %196 = vperm.xlu0 %195, %v190
    %v197 = vpop.permute.xlu0 %196
    %200 = vset.pattern.permute.xlu0 0
    %201 = vperm.xlu0 %200, %v191
    %v202 = vpop.permute.xlu0 %201
    %205 = vset.pattern.permute.xlu0 0
    %206 = vperm.xlu0 %205, %v192
    %v207 = vpop.permute.xlu0 %206
    %210 = vset.pattern.permute.xlu0 0
    %211 = vperm.xlu0 %210, %v193
    %v212 = vpop.permute.xlu0 %211
    %vm214 = vcmask 261120
    %v216 = vsel %vm214, %v186, 0
    %v219 = vsel %vm214, %v187, 0
    %v222 = vsel %vm214, %v188, 0
    %v225 = vsel %vm214, %v189, 0
    %227 = vmatprep.subr.mxu0 0.0
    %228 = vmatpush1.msra.mxu0 %v182
    %229 = vmatprep.subr.mxu0 0.0
    %230 = vmatpush1.msra.mxu0 %v183
    %231 = vmatprep.subr.mxu0 0.0
    %232 = vmatpush1.msra.mxu0 %v184
    %233 = vmatprep.subr.mxu0 0.0
    %234 = vmatpush1.msra.mxu0 %v185
    %235 = vmatprep.subr.mxu0 0.0
    %236 = vmatpush1.msra.mxu0 0.0
    %237 = vmatprep.subr.mxu0 0.0
    %238 = vmatpush1.msra.mxu0 0.0
    %239 = vmatprep.subr.mxu0 0.0
    %240 = vmatpush1.msra.mxu0 0.0
    %241 = vmatprep.subr.mxu0 0.0
    %242 = vmatpush1.msra.mxu0 0.0
    %243 = vmatprep.subr.mxu0 0.0
    %244 = vmatpush1.msra.mxu0 0.0
    %245 = vmatprep.subr.mxu0 0.0
    %246 = vmatpush1.msra.mxu0 0.0
    %247 = vmatprep.subr.mxu0 0.0
    %248 = vmatpush1.msra.mxu0 0.0
    %249 = vmatprep.subr.mxu0 0.0
    %250 = vmatpush1.msra.mxu0 0.0
    %251 = vmatprep.subr.mxu0 0.0
    %252 = vmatpush1.msra.mxu0 0.0
    %253 = vmatprep.subr.mxu0 0.0
    %254 = vmatpush1.msra.mxu0 0.0
    %255 = vmatprep.subr.mxu0 0.0
    %256 = vmatpush1.msra.mxu0 0.0
    %257 = vmatprep.subr.mxu0 0.0
    %258 = vmatpush1.msra.mxu0 0.0
    %259 = vmatprep.subr.mxu0 0.0
    %260 = vmatpush1.msra.mxu0 0.0
    %261 = vmatprep.subr.mxu0 0.0
    %262 = vmatpush1.msra.mxu0 0.0
    %263 = vmatprep.subr.mxu0 0.0
    %264 = vmatpush1.msra.mxu0 0.0
    %265 = vmatprep.subr.mxu0 0.0
    %266 = vmatpush1.msra.mxu0 0.0
    %267 = vmatprep.subr.mxu0 0.0
    %268 = vmatpush1.msra.mxu0 0.0
    %269 = vmatprep.subr.mxu0 0.0
    %270 = vmatpush1.msra.mxu0 0.0
    %271 = vmatprep.subr.mxu0 0.0
    %272 = vmatpush1.msra.mxu0 0.0
    %273 = vmatprep.subr.mxu0 0.0
    %274 = vmatpush1.msra.mxu0 0.0
    %275 = vmatprep.subr.mxu0 0.0
    %276 = vmatpush1.msra.mxu0 0.0
    %277 = vmatprep.subr.mxu0 0.0
    %278 = vmatpush1.msra.mxu0 0.0
    %279 = vmatprep.subr.mxu0 0.0
    %280 = vmatpush1.msra.mxu0 0.0
    %281 = vmatprep.subr.mxu0 0.0
    %282 = vmatpush1.msra.mxu0 0.0
    %283 = vmatprep.subr.mxu0 0.0
    %284 = vmatpush1.msra.mxu0 0.0
    %285 = vmatprep.subr.mxu0 0.0
    %286 = vmatpush1.msra.mxu0 0.0
    %287 = vmatprep.subr.mxu0 0.0
    %288 = vmatpush1.msra.mxu0 0.0
    %289 = vmatprep.subr.mxu0 0.0
    %290 = vmatpush1.msra.mxu0 0.0
    %291 = vmatprep.mubr.f32.mxu0 0.0
    %292 = vmatmul.mubr.f32.gmra.mrb[0].mxu0 %v216
    %v293 = vpop.f32.mrb[0].mxu0
    %v294 = vadd.f32 %v197, %v293
    %v295 = vpop.f32.mrb[0].mxu0
    %296 = vmatprep.mubr.f32.mxu0 0.0
    %297 = vmatmul.mubr.f32.gmra.mrb[0].mxu0 %v219
    %v298 = vpop.f32.mrb[0].mxu0
    %v299 = vadd.f32 %v202, %v298
    %v300 = vpop.f32.mrb[0].mxu0
    %301 = vmatprep.mubr.f32.mxu0 0.0
    %302 = vmatmul.mubr.f32.gmra.mrb[0].mxu0 %v222
    %v303 = vpop.f32.mrb[0].mxu0
    %v304 = vadd.f32 %v207, %v303
    %v305 = vpop.f32.mrb[0].mxu0
    %306 = vmatprep.mubr.f32.mxu0 0.0
    %307 = vmatmul.mubr.f32.gmra.mrb[0].mxu0 %v225
    %v308 = vpop.f32.mrb[0].mxu0
    %v309 = vadd.f32 %v212, %v308
    %v310 = vpop.f32.mrb[0].mxu0
    %311 = vdwg.mxu0
    %vm312 = vcmp.gt.f32.partialorder %v294, 0.0
    %vm313 = vcmp.gt.f32.partialorder %v299, 0.0
    %vm314 = vcmp.gt.f32.partialorder %v304, 0.0
    %vm315 = vcmp.gt.f32.partialorder %v309, 0.0
    %v316 = vmul.f32 %v177, %v294
    %v317 = vmul.f32 %v177, %v299
    %v318 = vmul.f32 %v177, %v304
    %v319 = vmul.f32 %v177, %v309
    %v320 = vsel %vm312, %v294, %v316
    %v321 = vsel %vm313, %v299, %v317
    %v322 = vsel %vm314, %v304, %v318
    %v323 = vsel %vm315, %v309, %v319
    %v324 = vld [vmem:[%s6] sm:$0xff]
    %v325 = vld [vmem:[%s6 + $0x8] sm:$0xff]
    %v326 = vld [vmem:[%s6 + $0x10] sm:$0xff]
    %v327 = vld [vmem:[%s6 + $0x18] sm:$0xff]
    %329 = vset.pattern.permute.xlu0 0
    %330 = vperm.xlu0 %329, %v324
    %v331 = vpop.permute.xlu0 %330
    %334 = vset.pattern.permute.xlu0 0
    %335 = vperm.xlu0 %334, %v325
    %v336 = vpop.permute.xlu0 %335
    %339 = vset.pattern.permute.xlu0 0
    %340 = vperm.xlu0 %339, %v326
    %v341 = vpop.permute.xlu0 %340
    %344 = vset.pattern.permute.xlu0 0
    %345 = vperm.xlu0 %344, %v327
    %v346 = vpop.permute.xlu0 %345
    %v348 = vmul.f32 %v320, %v331
    %v349 = vmul.f32 %v321, %v336
    %v350 = vmul.f32 %v322, %v341
    %v351 = vmul.f32 %v323, %v346
    %v352 = vadd.f32 %v348, %v349
    %v353 = vadd.f32 %v352, %v350
    %v354 = vadd.f32 %v353, %v351
    %v355 = vrot.slane %v354, 4
    %v356 = vadd.f32 %v354, %v355
    %v357 = vrot.slane %v356, 2
    %v358 = vadd.f32 %v356, %v357
    %v359 = vrot.slane %v358, 1
    %v360 = vadd.f32 %v358, %v359
    %v361 = vstv %s40
    %v362 = vadd.f32 %v360, %v361
    %363 = vst [vmem:[%s7] sm:$0x1] %v362
    // Predicated region
    $region34: #{qvalue_forward.1} parent=1 // pred_check
      _
    $region35: #{qvalue_forward.1} parent=1 // pred_check_branch
      %365 = sbr.rel (0) target = $region37
    $region36: #{qvalue_forward.1} parent=1 // pred_region
      _
    $region37: #{qvalue_forward.1} parent=1 // pred_fallthru
      _
    // Predicated region
    $region38: #{qvalue_forward.1} parent=1 // pred_check
      _
    $region39: #{qvalue_forward.1} parent=1 // pred_check_branch
      %367 = sbr.rel (0) target = $region41
    $region40: #{qvalue_forward.1} parent=1 // pred_region
      _
    $region41: #{qvalue_forward.1} parent=1 // pred_fallthru
      _
    %368 = vsyncpa [#allocation3], 1

</llo_original>
